<compile_context>
chip_gen: v5e
topology: v5e:2x2
jax: 0.10.0
libtpu: 0.0.40
codegen_flags: <defaults>
</compile_context>

<pallas_src>
import jax
import jax.numpy as jnp
from jax import lax
from jax.experimental import pallas as pl
from jax.experimental.pallas import tpu as pltpu

REGION = 4  # self.region_number in the PyTorch module


def _round_up(n, m):
    return ((n + m - 1) // m) * m


def _vmem_capacity_bytes():
    try:
        return int(pltpu.get_tpu_info().vmem_capacity_bytes)
    except Exception:
        return 64 * 1024 * 1024  # conservative fallback (v7x per-TC VMEM)


def _is_v5e():
    try:
        kind = jax.devices()[0].device_kind.lower()
        return ("v5 lite" in kind) or ("v5e" in kind) or ("v5litepod" in kind)
    except Exception:
        return False


def ca_mul_kernel(att_ref, x_ref, o_ref):
    # att_ref: (1, R, C, 1)  per-batch attention (precomputed in the wrapper)
    # x_ref:   (1, C, T)     feature-map tile (channels x flattened-spatial tile)
    # o_ref:   (1, R, C, T)  output tile
    att = att_ref[0]                    # (R, C, 1) -- sublane=C, lane-splat broadcast
    x = x_ref[0]                        # (C, T)
    o_ref[0] = (att * x[None, :, :]).astype(o_ref.dtype)


def compute_att(x_deg, w1, w2):
    """conv_du of the PyTorch module on a (B, C_in, 1, 1) tensor == tiny matmuls."""
    R, C_out, Cg = w2.shape
    y = jnp.dot(x_deg.astype(jnp.float32), w1.astype(jnp.float32).T,
                precision=lax.Precision.HIGHEST,
                preferred_element_type=jnp.float32)        # Conv2d 1x1, no bias
    y = jnp.where(y > 0, y, 0.1 * y)                        # LeakyReLU(0.1)
    y = y.reshape(-1, R, Cg)
    att = jnp.einsum('bgi,goi->bgo', y, w2.astype(jnp.float32),
                     precision=lax.Precision.HIGHEST,
                     preferred_element_type=jnp.float32)    # grouped 1x1 conv
    return jax.nn.sigmoid(att)                              # (B, R, C_out), f32


def _pick_tile_hw(hw_pad, C, R, itemsize, att_itemsize, n_batch, block_budget,
                  max_k=128):
    """Largest t_hw = 128*k with k | (hw_pad//128), fitting the VMEM block budget."""
    n128 = hw_pad // 128
    per_k = 128 * (C + R * C) * itemsize           # (x tile + out tile) bytes per 128 lanes
    att_bytes = R * C * att_itemsize
    k_budget = max(1, (block_budget - 2 * att_bytes) // (2 * per_k))
    k_cap = min(n128, max_k, int(k_budget))
    # Keep >=2 grid steps so both v7x TensorCores have work even when B == 1.
    if n_batch == 1 and n128 >= 2:
        k_cap = min(k_cap, n128 // 2)
    k_cap = max(1, k_cap)
    for k in range(k_cap, 0, -1):
        if n128 % k == 0:
            return 128 * k
    return 128


def ca_layer(x_feat, x_deg, w1, w2):
    """x_feat: (B, C, H, W)  x_deg: (B, C_in)  -> (B, R, C, H, W)"""
    B, C, H, W = x_feat.shape
    HW = H * W
    R, C_out, Cg = w2.shape
    assert C_out == C, "att.view(b, -1, c, 1, 1) requires channels_out == C"

    # v5e has no bf16 VALU: keep att in f32 there so the multiply promotes to f32.
    # Elsewhere multiply natively in the feature-map dtype.
    if x_feat.dtype == jnp.float32 or not _is_v5e():
        att_dtype = x_feat.dtype
    else:
        att_dtype = jnp.float32

    att = compute_att(x_deg, w1, w2).astype(att_dtype)[..., None]   # (B, R, C, 1)

    # Lane-align HW to 128 only (no tile-sized padding); exact cover otherwise.
    hw_pad = _round_up(HW, 128)
    x_flat = x_feat.reshape(B, C, HW)
    if hw_pad != HW:
        # TODO(synk): handle the <128-lane tail with an in-kernel masked store
        # instead of this (at most 127-lane) pad + final slice.
        x_flat = jnp.pad(x_flat, ((0, 0), (0, 0), (0, hw_pad - HW)))

    itemsize = jnp.dtype(x_feat.dtype).itemsize
    att_itemsize = jnp.dtype(att_dtype).itemsize

    # Generation-aware VMEM ceiling (leave Mosaic internal-scratch headroom).
    vmem_cap = _vmem_capacity_bytes()
    gen_cap = (100 * 1024 * 1024) if vmem_cap >= (128 * 1024 * 1024) else (48 * 1024 * 1024)
    block_budget = int(0.85 * gen_cap)

    t_hw = _pick_tile_hw(hw_pad, C, R, itemsize, att_itemsize, B, block_budget)
    n_hw = hw_pad // t_hw

    # Real double-buffered block bytes in the actual DMA dtypes.
    x_block = C * t_hw * itemsize
    out_block = R * C * t_hw * itemsize
    att_block = R * C * att_itemsize
    needed = 2 * (x_block + out_block + att_block)
    vmem_limit = int(min(gen_cap, max(32 * 1024 * 1024, int(1.25 * needed))))

    bytes_accessed = (B * C * hw_pad + B * R * C * hw_pad) * itemsize + B * R * C * att_itemsize
    cost = pl.CostEstimate(flops=B * R * C * hw_pad, transcendentals=0,
                           bytes_accessed=bytes_accessed)

    out = pl.pallas_call(
        ca_mul_kernel,
        out_shape=jax.ShapeDtypeStruct((B, R, C, hw_pad), x_feat.dtype),
        grid_spec=pltpu.PrefetchScalarGridSpec(
            num_scalar_prefetch=0,
            grid=(B, n_hw),
            in_specs=[
                pl.BlockSpec((1, R, C, 1), lambda b, t: (b, 0, 0, 0)),
                pl.BlockSpec((1, C, t_hw), lambda b, t: (b, 0, t)),
            ],
            out_specs=pl.BlockSpec((1, R, C, t_hw), lambda b, t: (b, 0, 0, t)),
        ),
        compiler_params=pltpu.CompilerParams(
            dimension_semantics=("parallel", "parallel"),
            vmem_limit_bytes=vmem_limit,
        ),
        cost_estimate=cost,
    )(att, x_flat)

    if hw_pad != HW:
        out = out[:, :, :, :HW]
    return out.reshape(B, R, C, H, W)


def ca_layer_ref(x_feat, x_deg, w1, w2):
    """Pure-JAX reference mirroring the PyTorch forward."""
    B, C, H, W = x_feat.shape
    R, C_out, Cg = w2.shape
    y = jnp.dot(x_deg, w1.T, precision=lax.Precision.HIGHEST)   # Conv2d 1x1, no bias
    y = jnp.where(y > 0, y, 0.1 * y)                            # LeakyReLU(0.1)
    y = y.reshape(B, R, Cg)
    att = jnp.einsum('bgi,goi->bgo', y, w2,
                     precision=lax.Precision.HIGHEST)           # grouped 1x1 conv
    att = jax.nn.sigmoid(att)                                   # (B, R, C_out)
    return x_feat[:, None, :, :, :] * att[:, :, :, None, None]


if __name__ == "__main__":
    key = jax.random.PRNGKey(0)
    k0, k1, k2, k3 = jax.random.split(key, 4)

    B, C, H, W = 2, 8, 16, 16        # feature map B*C*H*W  (HW = 256, 128-aligned)
    C_in = C                          # degradation representation B*C
    C_out = C                         # required by att.view(b, -1, c, 1, 1)
    R = REGION

    x_feat = jax.random.normal(k0, (B, C, H, W), dtype=jnp.float32)
    x_deg = jax.random.normal(k1, (B, C_in), dtype=jnp.float32)

    # Conv2d(channels_in, 16, 1, bias=False): torch weight (16, C_in, 1, 1)
    w1 = 0.2 * jax.random.normal(k2, (R * R, C_in), dtype=jnp.float32)
    # Conv2d(16, C_out*4, 1, groups=4, bias=False): torch weight (C_out*4, 4, 1, 1)
    w2_torch = 0.2 * jax.random.normal(k3, (C_out * R, R), dtype=jnp.float32)
    w2 = w2_torch.reshape(R, C_out, R)   # (group, out_per_group, in_per_group)

    out = ca_layer(x_feat, x_deg, w1, w2)
    out = jax.block_until_ready(out)

    ref = ca_layer_ref(x_feat, x_deg, w1, w2)
    assert out.shape == (B, R, C, H, W)
    assert jnp.allclose(out, ref, rtol=1e-5, atol=1e-5), "mismatch vs reference"

    print("KERNEL_OK")
</pallas_src>

<mosaic_0001>
module attributes {stable_mosaic.version = 11 : i64} {
  func.func @ca_mul_kernel(%arg0: i32, %arg1: i32, %arg2: memref<1x4x8x1xf32, #tpu.memory_space<vmem>>, %arg3: memref<1x8x256xf32, #tpu.memory_space<vmem>>, %arg4: memref<1x4x8x256xf32, #tpu.memory_space<vmem>>) attributes {dimension_semantics = [#tpu.dimension_semantics<parallel>, #tpu.dimension_semantics<parallel>], iteration_bounds = array<i64: 2, 1>, scalar_prefetch = 0 : i64, scratch_operands = 0 : i64, tpu.core_type = #tpu.core_type<tc>, window_params = [{transform_indices = @transform_0, window_bounds = array<i64: 1, 4, 8, 1>}, {transform_indices = @transform_1, window_bounds = array<i64: 1, 8, 256>}, {transform_indices = @transform_2, window_bounds = array<i64: 1, 4, 8, 256>}]} {
    %c0 = arith.constant 0 : index
    %c0_0 = arith.constant 0 : index
    %c0_1 = arith.constant 0 : index
    %c0_2 = arith.constant 0 : index
    %0 = vector.load %arg2[%c0, %c0_0, %c0_1, %c0_2] : memref<1x4x8x1xf32, #tpu.memory_space<vmem>>, vector<1x4x8x1xf32>
    %1 = vector.shape_cast %0 : vector<1x4x8x1xf32> to vector<4x8x1xf32>
    %c0_3 = arith.constant 0 : index
    %c0_4 = arith.constant 0 : index
    %c0_5 = arith.constant 0 : index
    %2 = vector.load %arg3[%c0_3, %c0_4, %c0_5] : memref<1x8x256xf32, #tpu.memory_space<vmem>>, vector<1x8x256xf32>
    %3 = vector.shape_cast %2 : vector<1x8x256xf32> to vector<8x256xf32>
    %4 = vector.shape_cast %3 : vector<8x256xf32> to vector<1x8x256xf32>
    %5 = vector.broadcast %1 : vector<4x8x1xf32> to vector<4x8x256xf32>
    %6 = vector.broadcast %4 : vector<1x8x256xf32> to vector<4x8x256xf32>
    %7 = arith.mulf %5, %6 : vector<4x8x256xf32>
    %c0_6 = arith.constant 0 : index
    %c0_7 = arith.constant 0 : index
    %c0_8 = arith.constant 0 : index
    %c0_9 = arith.constant 0 : index
    %8 = vector.load %arg4[%c0_6, %c0_7, %c0_8, %c0_9] : memref<1x4x8x256xf32, #tpu.memory_space<vmem>>, vector<1x4x8x256xf32>
    %9 = vector.shape_cast %8 : vector<1x4x8x256xf32> to vector<4x8x256xf32>
    %10 = vector.shape_cast %7 : vector<4x8x256xf32> to vector<1x4x8x256xf32>
    tpu.vector_store %arg4[%c0_6, %c0_7, %c0_8, %c0_9], %10 {strides = array<i32>} : memref<1x4x8x256xf32, #tpu.memory_space<vmem>>, vector<1x4x8x256xf32>,
    return
  }
  func.func @transform_0(%arg0: i32, %arg1: i32) -> (i32, i32, i32, i32) {
    %c0_i32 = arith.constant 0 : i32
    %c0_i32_0 = arith.constant 0 : i32
    %c0_i32_1 = arith.constant 0 : i32
    %c0_i32_2 = arith.constant 0 : i32
    return %arg0, %c0_i32, %c0_i32_0, %c0_i32_1 : i32, i32, i32, i32
  }
  func.func @transform_1(%arg0: i32, %arg1: i32) -> (i32, i32, i32) {
    %c0_i32 = arith.constant 0 : i32
    %c0_i32_0 = arith.constant 0 : i32
    return %arg0, %c0_i32, %arg1 : i32, i32, i32
  }
  func.func @transform_2(%arg0: i32, %arg1: i32) -> (i32, i32, i32, i32) {
    %c0_i32 = arith.constant 0 : i32
    %c0_i32_0 = arith.constant 0 : i32
    %c0_i32_1 = arith.constant 0 : i32
    return %arg0, %c0_i32, %c0_i32_0, %arg1 : i32, i32, i32, i32
  }
}

</mosaic_0001>

<llo_original>
// kernel: tpu_custom_call.1
$region0: #{tpu_custom_call.1}
  #allocation0 [shape = 'u32[]', space=smem, size = 0x4, offset = 0x4, fixed_abs, tag = 'smem constant byte address 0x4 - core index']
  #allocation1 [shape = 'u32[72,128]{1,0:T(1,128)}', space=vmem, size = 0x9000, scoped, tag = 'internal scratch']
  %s0 = inlined_call_operand.vmem [shape: f32[2,4,8,1], index: 0, kind: input, shape index: {}]
  %s1 = inlined_call_operand.vmem [shape: f32[2,8,256], index: 1, kind: input, shape index: {}]
  %s2 = inlined_call_operand.hbm [shape: f32[2,4,8,256], index: 2, kind: output, shape index: {}]
  %s3 = sld [smem:[#allocation0]]
  $region41: #{tpu_custom_call.1} parent=0
    _
  %s5 = ssub.s32 1, %s3
  %s6 = scalar_select 0, %s5, %s3
  $region1: #{tpu_custom_call.1} parent=0
    #allocation2 [shape = 'u8[65536]{0}', space=vmem, size = 0x10000, scoped, tag = 'output window, operand 0']
    #allocation3 [shape = 's32[2]{0}', space=sflag, size = 0x8, scoped, tag = 'scoped memory for tpu_custom_call.1']
    %7 = vsyncpa [#allocation3], 0
    %s8 = scalar_lea.sflag [#allocation3], 1
    %9 = vsyncpa %s8, 0
    loop: start=0, step=1, limit=4
    $region2: #{tpu_custom_call.1} parent=1 // loop_pre_header
      _
    $region3: #{tpu_custom_call.1} parent=1 // loop_header
      %s11 = sphi 0, %s15
      %p12 = scmp.ge.s32.totalorder %s11, 4
      %s18 = sphi 0, %s30
      %s19 = sphi 0, %s26
      %s20 = sphi 0, %s18
      %s21 = sphi 0, %s19
      %s22 = sphi 0, %s20
      %s23 = sphi 0, %s21
      %s33 = sphi 0, %s35
      %s36 = sphi 0, %s33
      %s37 = sphi 0, %s36
      %s53 = sphi 0, %s37
      %s61 = sphi 0, %s63
      %s64 = sphi 0, %s61
      %s65 = sphi 0, %s64
      %s81 = sphi 0, %s65
      %s89 = sphi 0, %s91
      %s92 = sphi 0, %s89
      %s93 = sphi 0, %s92
      %s109 = sphi 0, %s93
    $region4: #{tpu_custom_call.1} parent=1 // loop_header_branch
      %14 = sbr.rel (%p12) target = $region8
    $region5: #{tpu_custom_call.1} parent=1 // loop_body
      %s16 = ssub.s32 %s11, 1
      %s17 = ssub.s32 %s11, 2
      %s24 = sadd.s32 1, %s19
      %p25 = scmp.ge.s32.totalorder %s24, 1
      %s26 = scalar_select %p25, 0, %s24
      %s27 = sadd.s32 1, %s18
      %s28 = scalar_select %p25, %s27, %s18
      %p29 = scmp.ge.s32.totalorder %s28, 2
      %s30 = scalar_select %p29, 0, %s28
      %s31 = ssub.s32 %s18, %s30
      %p32 = scmp.eq.s32.totalorder %s31, 0
      %s34 = sadd.s32 %s33, 1
      %s35 = scalar_select %p32, %s33, %s34
      %p38 = pneg %p32
      %p39 = scmp.eq.s32.totalorder %s11, 1
      %p40 = por %p38, %p39
      %p41 = scmp.ne.s32.totalorder %s33, %s36
      %p42 = scmp.eq.s32.totalorder %s11, 0
      %p43 = por %p41, %p42
      %p44 = scmp.ne.s32.totalorder %s33, %s36
      %p45 = scmp.eq.s32.totalorder %s16, 1
      %p46 = por %p44, %p45
      %p47 = scmp.ne.s32.totalorder %s36, %s37
      %p48 = scmp.eq.s32.totalorder %s16, 0
      %p49 = por %p47, %p48
      %p50 = scmp.ne.s32.totalorder %s36, %s37
      %p51 = scmp.eq.s32.totalorder %s17, 1
      %p52 = por %p50, %p51
      %p54 = scmp.ne.s32.totalorder %s37, %s53
      %p55 = scmp.eq.s32.totalorder %s17, 0
      %p56 = por %p54, %p55
      %s57 = ssub.s32 %s18, %s30
      %s58 = ssub.s32 %s19, %s26
      %s59 = sor.u32 %s57, %s58
      %p60 = scmp.eq.s32.totalorder %s59, 0
      %s62 = sadd.s32 %s61, 1
      %s63 = scalar_select %p60, %s61, %s62
      %p66 = pneg %p60
      %p67 = scmp.eq.s32.totalorder %s11, 1
      %p68 = por %p66, %p67
      %p69 = scmp.ne.s32.totalorder %s61, %s64
      %p70 = scmp.eq.s32.totalorder %s11, 0
      %p71 = por %p69, %p70
      %p72 = scmp.ne.s32.totalorder %s61, %s64
      %p73 = scmp.eq.s32.totalorder %s16, 1
      %p74 = por %p72, %p73
      %p75 = scmp.ne.s32.totalorder %s64, %s65
      %p76 = scmp.eq.s32.totalorder %s16, 0
      %p77 = por %p75, %p76
      %p78 = scmp.ne.s32.totalorder %s64, %s65
      %p79 = scmp.eq.s32.totalorder %s17, 1
      %p80 = por %p78, %p79
      %p82 = scmp.ne.s32.totalorder %s65, %s81
      %p83 = scmp.eq.s32.totalorder %s17, 0
      %p84 = por %p82, %p83
      %s85 = ssub.s32 %s18, %s30
      %s86 = ssub.s32 %s19, %s26
      %s87 = sor.u32 %s85, %s86
      %p88 = scmp.eq.s32.totalorder %s87, 0
      %s90 = sadd.s32 %s89, 1
      %s91 = scalar_select %p88, %s89, %s90
      %p94 = pneg %p88
      %p95 = scmp.eq.s32.totalorder %s11, 1
      %p96 = por %p94, %p95
      %p97 = scmp.ne.s32.totalorder %s89, %s92
      %p98 = scmp.eq.s32.totalorder %s11, 0
      %p99 = por %p97, %p98
      %p100 = scmp.ne.s32.totalorder %s89, %s92
      %p101 = scmp.eq.s32.totalorder %s16, 1
      %p102 = por %p100, %p101
      %p103 = scmp.ne.s32.totalorder %s92, %s93
      %p104 = scmp.eq.s32.totalorder %s16, 0
      %p105 = por %p103, %p104
      %p106 = scmp.ne.s32.totalorder %s92, %s93
      %p107 = scmp.eq.s32.totalorder %s17, 1
      %p108 = por %p106, %p107
      %p110 = scmp.ne.s32.totalorder %s93, %s109
      %p111 = scmp.eq.s32.totalorder %s17, 0
      %p112 = por %p110, %p111
      %p113 = scmp.le.s32.totalorder 1, %s11
      %p114 = scmp.lt.s32.totalorder %s11, 3
      %p115 = pnand %p113, %p114
      %p116 = pneg %p115
      // Predicated region
      $region9: #{tpu_custom_call.1} parent=5 // pred_check
        _
      $region10: #{tpu_custom_call.1} parent=5 // pred_check_branch
        %118 = sbr.rel (%p115) target = $region12
      $region11: #{tpu_custom_call.1} parent=5 // pred_region
        %s119 = ssub.s32 %s11, 1
      $region12: #{tpu_custom_call.1} parent=5 // pred_fallthru
        _
      %p120 = scmp.lt.s32.totalorder %s11, 2
      // Predicated region
      $region13: #{tpu_custom_call.1} parent=5 // pred_check
        %p121 = pneg %p120
      $region14: #{tpu_custom_call.1} parent=5 // pred_check_branch
        %123 = sbr.rel (%p121) target = $region16
      $region15: #{tpu_custom_call.1} parent=5 // pred_region
        // Predicated region
        $region17: #{tpu_custom_call.1} parent=15 // pred_check
          %p124 = pneg %p43
        $region18: #{tpu_custom_call.1} parent=15 // pred_check_branch
          %126 = sbr.rel (%p124) target = $region20
        $region19: #{tpu_custom_call.1} parent=15 // pred_region
          %p127 = scmp.lt.s32.totalorder %s18, 1
          %s128 = scalar_select %p127, %s18, 1
          %s129 = smul.addr %s128, 4
          %s130 = smul.addr %s129, 8
          %s131 = scalar_lea.vmem %s0, %s130
        $region20: #{tpu_custom_call.1} parent=15 // pred_fallthru
          _
        // Predicated region
        $region21: #{tpu_custom_call.1} parent=15 // pred_check
          %p132 = pneg %p71
        $region22: #{tpu_custom_call.1} parent=15 // pred_check_branch
          %134 = sbr.rel (%p132) target = $region24
        $region23: #{tpu_custom_call.1} parent=15 // pred_region
          %s135 = smul.u32 2, %s19
          %p136 = scmp.lt.s32.totalorder %s18, 1
          %s137 = scalar_select %p136, %s18, 1
          %p138 = scmp.lt.s32.totalorder %s135, 1
          %s139 = scalar_select %p138, %s135, 1
          %s140 = smul.addr %s137, 2
          %s141 = sadd.s32 %s139, %s140
          %s142 = smul.addr %s141, 8
          %s143 = scalar_lea.vmem %s1, %s142
          %s144 = smul.u32 2, %s19
        $region24: #{tpu_custom_call.1} parent=15 // pred_fallthru
          _
      $region16: #{tpu_custom_call.1} parent=5 // pred_fallthru
        _
      %p145 = scmp.le.s32.totalorder 1, %s11
      %p146 = scmp.lt.s32.totalorder %s11, 3
      %p147 = pnand %p145, %p146
      %p148 = pneg %p147
      // Predicated region
      $region25: #{tpu_custom_call.1} parent=5 // pred_check
        _
      $region26: #{tpu_custom_call.1} parent=5 // pred_check_branch
        %150 = sbr.rel (%p147) target = $region28
      $region27: #{tpu_custom_call.1} parent=5 // pred_region
        %s151 = ssub.s32 %s11, 1
        %p152 = scmp.lt.s32.totalorder %s20, 1
        %s153 = scalar_select %p152, %s20, 1
        %s154 = smul.addr %s153, 4
        %s155 = smul.addr %s154, 8
        %s156 = scalar_lea.vmem %s0, %s155
        %p157 = pneg %p49
        %p158 = pneg %p46
        %s159 = smul.u32 2, %s21
        %p160 = scmp.lt.s32.totalorder %s20, 1
        %s161 = scalar_select %p160, %s20, 1
        %p162 = scmp.lt.s32.totalorder %s159, 1
        %s163 = scalar_select %p162, %s159, 1
        %s164 = smul.addr %s161, 2
        %s165 = sadd.s32 %s163, %s164
        %s166 = smul.addr %s165, 8
        %s167 = scalar_lea.vmem %s1, %s166
        %p168 = pneg %p77
        %p169 = pneg %p74
        %p170 = pneg %p105
        %p171 = pneg %p102
        %s172 = sand.u32 %s92, 1
        %s173 = scalar_lea.sflag [#allocation3], %s172
        %s174 = sand.u32 %s92, 1
        %s175 = smul.addr %s174, 64
        %s176 = scalar_lea.vmem [#allocation2], %s175
        %p177 = scmp.lt.s32.totalorder %s20, 1
        %s178 = scalar_select %p177, %s20, 1
        %s179 = smul.addr %s178, 4
        %s180 = smul.addr %s179, 8
        %s181 = scalar_lea.vmem %s0, %s180
        %s182 = smul.u32 2, %s21
        %p183 = scmp.lt.s32.totalorder %s20, 1
        %s184 = scalar_select %p183, %s20, 1
        %p185 = scmp.lt.s32.totalorder %s182, 1
        %s186 = scalar_select %p185, %s182, 1
        %s187 = smul.addr %s184, 2
        %s188 = sadd.s32 %s186, %s187
        %s189 = smul.addr %s188, 8
        %s190 = scalar_lea.vmem %s1, %s189
        %s191 = smul.u32 2, %s21
        %s192 = smul.u32 2, %s21
        %v193 = vld [vmem:[%s181] sm:$0xff]
        %v194 = vld [vmem:[%s181 + $0x8] sm:$0xff]
        %v195 = vld [vmem:[%s181 + $0x10] sm:$0xff]
        %v196 = vld [vmem:[%s181 + $0x18] sm:$0xff]
        %v197 = vld [vmem:[%s190] sm:$0xff]
        %v198 = vld [vmem:[%s190 + $0x8] sm:$0xff]
        %200 = vset.pattern.permute.xlu0 0
        %201 = vperm.xlu0 %200, %v193
        %v202 = vpop.permute.xlu0 %201
        %205 = vset.pattern.permute.xlu0 0
        %206 = vperm.xlu0 %205, %v194
        %v207 = vpop.permute.xlu0 %206
        %210 = vset.pattern.permute.xlu0 0
        %211 = vperm.xlu0 %210, %v195
        %v212 = vpop.permute.xlu0 %211
        %215 = vset.pattern.permute.xlu0 0
        %216 = vperm.xlu0 %215, %v196
        %v217 = vpop.permute.xlu0 %216
        %v219 = vmul.f32 %v202, %v197
        %v220 = vmul.f32 %v202, %v198
        %v221 = vmul.f32 %v207, %v197
        %v222 = vmul.f32 %v207, %v198
        %v223 = vmul.f32 %v212, %v197
        %v224 = vmul.f32 %v212, %v198
        %v225 = vmul.f32 %v217, %v197
        %v226 = vmul.f32 %v217, %v198
        %227 = vst [vmem:[%s176] sm:$0xff] %v219
        %228 = vst [vmem:[%s176 + $0x8] sm:$0xff] %v220
        %229 = vst [vmem:[%s176 + $0x10] sm:$0xff] %v221
        %230 = vst [vmem:[%s176 + $0x18] sm:$0xff] %v222
        %231 = vst [vmem:[%s176 + $0x20] sm:$0xff] %v223
        %232 = vst [vmem:[%s176 + $0x28] sm:$0xff] %v224
        %233 = vst [vmem:[%s176 + $0x30] sm:$0xff] %v225
        %234 = vst [vmem:[%s176 + $0x38] sm:$0xff] %v226
        %s235 = sand.u32 %s92, 1
        %s236 = scalar_lea.sflag [#allocation3], %s235
        %s237 = sand.u32 %s92, 1
        %s238 = smul.addr %s237, 64
        %s239 = scalar_lea.vmem [#allocation2], %s238
        // Predicated region
        $region29: #{tpu_custom_call.1} parent=27 // pred_check
          %p240 = pneg %p102
        $region30: #{tpu_custom_call.1} parent=27 // pred_check_branch
          %242 = sbr.rel (%p240) target = $region32
        $region31: #{tpu_custom_call.1} parent=27 // pred_region
          %s243 = smul.u32 2, %s21
          %245 = vsyncadd %s236, 0
          %s246 = smul.addr %s20, 8
          %s247 = sadd.s32 %s243, %s246
          %s248 = smul.addr %s247, 8
          %s249 = scalar_lea.hbm %s2, %s248
          %s250 = sshll.u32 %s239, 4
          %s251 = int_to_ptr.vmem [resolvable:$true] %s250
          %s252 = sshll.u32 %s249, 4
          %s253 = int_to_ptr.hbm [resolvable:$true] %s252
          %258 = dma.vmem_to_hbm [thread:$0]  %s251, 1024, %s253, %s236, 256, 256, 16
        $region32: #{tpu_custom_call.1} parent=27 // pred_fallthru
          _
      $region28: #{tpu_custom_call.1} parent=5 // pred_fallthru
        _
      %p259 = scmp.le.s32.totalorder 2, %s11
      // Predicated region
      $region33: #{tpu_custom_call.1} parent=5 // pred_check
        %p260 = pneg %p259
      $region34: #{tpu_custom_call.1} parent=5 // pred_check_branch
        %262 = sbr.rel (%p260) target = $region36
      $region35: #{tpu_custom_call.1} parent=5 // pred_region
        %s263 = ssub.s32 %s11, 2
        // Predicated region
        $region37: #{tpu_custom_call.1} parent=35 // pred_check
          %p264 = pneg %p108
        $region38: #{tpu_custom_call.1} parent=35 // pred_check_branch
          %266 = sbr.rel (%p264) target = $region40
        $region39: #{tpu_custom_call.1} parent=35 // pred_region
          %s267 = sand.u32 %s93, 1
          %s268 = scalar_lea.sflag [#allocation3], %s267
          %s269 = sand.u32 %s93, 1
          %s270 = smul.addr %s269, 64
          %s271 = scalar_lea.vmem [#allocation2], %s270
          %273 = dma.done %s268, 1024
        $region40: #{tpu_custom_call.1} parent=35 // pred_fallthru
          _
      $region36: #{tpu_custom_call.1} parent=5 // pred_fallthru
        _
    $region6: #{tpu_custom_call.1} parent=1 // loop_footer
      %s15 = sadd.s32 1, %s11
    $region7: #{tpu_custom_call.1} parent=1 // loop_footer_branch
      %10 = sbr.rel target = $region3
    $region8: #{tpu_custom_call.1} parent=1 // loop_exit
      _
    %274 = vsyncpa [#allocation3], 1
    %s275 = scalar_lea.sflag [#allocation3], 1
    %276 = vsyncpa %s275, 1

</llo_original>
